<compile_context>
chip_gen: v6e
topology: v6e:2x2x1
jax: 0.10.0
libtpu: 0.0.40
codegen_flags: <defaults>
</compile_context>

<pallas_src>
import jax
import jax.numpy as jnp
from jax.experimental import pallas as pl
from jax.experimental.pallas import tpu as pltpu

# ---- static configuration (small shapes consistent with the module) ----------
B = 2          # batch
C_IN = 4       # in_channels
C_OUT = 8      # out_channels (!= C_IN -> downsample branch is active)
T = 128        # sequence length (lane axis -> fully lane-dense)
K = 3          # conv kernel size
PAD = 1        # conv padding
STRIDE = 1     # stride=1 only (see TODO above)
EPS = 1e-5     # BatchNorm eps
N = B * T      # lane extent of the batch-stacked activations

# packed parameter-slab layout: [w1 | w2+down | t1 | t2+td]
NW1 = K * C_IN            # 12
NW2D = K * C_OUT + C_IN   # 28
OFF_W2D = NW1             # 12
OFF_T1 = NW1 + NW2D       # 40
OFF_T2D = OFF_T1 + 1      # 41
SLAB_COLS = OFF_T2D + 1   # 42


# ---- kernel: whole residual block, all batch elements at once ------------------
def resblock_kernel(x_ref, p_ref, out_ref):
    # x_ref:   (C_IN, B*T)   batch stacked on lanes, lane index l = b*T + t
    # p_ref:   (C_OUT, 42)   packed [w1 | w2+down | t1 | t2+td]
    # out_ref: (C_OUT, B*T)
    x = x_ref[...]

    # per-batch-element boundary masks (also kill the circular wrap of roll)
    lane = jax.lax.broadcasted_iota(jnp.int32, (1, N), 1)
    t_in_seq = lane % T
    left_edge = t_in_seq == 0        # tap reading t-1 must be zero here
    right_edge = t_in_seq == T - 1   # tap reading t+1 must be zero here

    def taps(a):
        # im2col for kernel_size=3, pad=1, stride=1: rows ordered k=0,1,2 (x Cin)
        left = jnp.where(left_edge, 0.0, pltpu.roll(a, shift=1, axis=1))
        # shift = N-1 is the circular equivalent of -1 (read t+1)
        right = jnp.where(right_edge, 0.0, pltpu.roll(a, shift=N - 1, axis=1))
        return jnp.concatenate([left, a, right], axis=0)

    w1 = p_ref[:, pl.ds(0, NW1)]            # (C_OUT, K*C_IN)
    w2d = p_ref[:, pl.ds(OFF_W2D, NW2D)]    # (C_OUT, K*C_OUT + C_IN)
    t1 = p_ref[:, pl.ds(OFF_T1, 1)]         # (C_OUT, 1)
    t2d = p_ref[:, pl.ds(OFF_T2D, 1)]       # (C_OUT, 1)

    # conv1 (k=3, pad=1, bias=False) + BN1 (scale folded into w1) + ReLU
    h = jnp.dot(w1, taps(x), preferred_element_type=jnp.float32) + t1
    h = jnp.maximum(h, 0.0)                 # (C_OUT, N)

    # conv2 + BN2 fused with the skip path (1x1 conv + BN, or identity) in ONE dot
    p2 = jnp.concatenate([taps(h), x], axis=0)          # (K*C_OUT + C_IN, N)
    o = jnp.dot(w2d, p2, preferred_element_type=jnp.float32) + t2d
    out_ref[...] = jnp.maximum(o, 0.0)


# ---- wrapper ------------------------------------------------------------------
def residual_block_forward(x, params):
    """x: (B, C_IN, T) float32 (PyTorch NCT).  Eval-mode BatchNorm semantics."""

    def bn_fold(prefix):
        scale = params[prefix + "_gamma"] * jax.lax.rsqrt(params[prefix + "_var"] + EPS)
        shift = params[prefix + "_beta"] - params[prefix + "_mean"] * scale
        return scale, shift

    def flatten_w(w, scale):
        # (C_OUT, Cin_layer, K) -> (C_OUT, K*Cin_layer) so that
        # w_flat[co, k*Cin + ci] == scale[co] * w[co, ci, k]  (matches im2col order)
        ws = scale[:, None, None] * w
        return jnp.transpose(ws, (0, 2, 1)).reshape(w.shape[0], K * w.shape[1])

    s1, t1 = bn_fold("bn1")
    s2, t2 = bn_fold("bn2")
    w1f = flatten_w(params["conv1_w"], s1)              # (C_OUT, K*C_IN)
    w2f = flatten_w(params["conv2_w"], s2)              # (C_OUT, K*C_OUT)

    if "down_w" in params:                               # 1x1 conv + BN downsample
        sd, td = bn_fold("bnd")
        wdf = sd[:, None] * params["down_w"][:, :, 0]    # (C_OUT, C_IN)
    else:                                                # identity skip
        assert C_IN == C_OUT, "identity skip requires in_channels == out_channels"
        wdf = jnp.eye(C_OUT, dtype=jnp.float32)
        td = jnp.zeros((C_OUT,), jnp.float32)

    # fuse conv2 weight with skip weight along the contraction axis; combine shifts
    w2d = jnp.concatenate([w2f, wdf], axis=1)            # (C_OUT, K*C_OUT + C_IN)
    t2d = t2 + td

    # single packed parameter slab (one input stream)
    slab = jnp.concatenate(
        [w1f, w2d, t1[:, None], t2d[:, None]], axis=1).astype(jnp.float32)
    assert slab.shape == (C_OUT, SLAB_COLS)

    # stack batch along lanes: (B, C_IN, T) -> (C_IN, B*T)
    x2 = jnp.transpose(x.astype(jnp.float32), (1, 0, 2)).reshape(C_IN, N)

    out2 = pl.pallas_call(
        resblock_kernel,
        out_shape=jax.ShapeDtypeStruct((C_OUT, N), jnp.float32),
        in_specs=[
            pl.BlockSpec(memory_space=pltpu.MemorySpace.VMEM),
            pl.BlockSpec(memory_space=pltpu.MemorySpace.VMEM),
        ],
        out_specs=pl.BlockSpec(memory_space=pltpu.MemorySpace.VMEM),
        compiler_params=pltpu.CompilerParams(vmem_limit_bytes=4 * 1024 * 1024),
    )(x2, slab)

    # (C_OUT, B*T) -> (B, C_OUT, T)
    return jnp.transpose(out2.reshape(C_OUT, B, T), (1, 0, 2))


# ---- pure-JAX reference (eval-mode BN), for correctness checking --------------
def reference_forward(x, params):
    dn = ("NCH", "OIH", "NCH")

    def conv1d(a, w, stride, padding):
        return jax.lax.conv_general_dilated(
            a, w, window_strides=(stride,), padding=[(padding, padding)],
            dimension_numbers=dn)

    def bn(h, prefix):
        scale = params[prefix + "_gamma"] * jax.lax.rsqrt(params[prefix + "_var"] + EPS)
        shift = params[prefix + "_beta"] - params[prefix + "_mean"] * scale
        return h * scale[None, :, None] + shift[None, :, None]

    out = jax.nn.relu(bn(conv1d(x, params["conv1_w"], STRIDE, PAD), "bn1"))
    out = bn(conv1d(out, params["conv2_w"], 1, PAD), "bn2")
    if "down_w" in params:
        identity = bn(conv1d(x, params["down_w"], STRIDE, 0), "bnd")
    else:
        identity = x
    return jax.nn.relu(out + identity)


# ---- deterministic parameter init (torch-style weight layouts) ----------------
def init_params(key):
    ks = jax.random.split(key, 8)

    def norm(k, shape, scale=0.3):
        return scale * jax.random.normal(k, shape, jnp.float32)

    p = {}
    p["conv1_w"] = norm(ks[0], (C_OUT, C_IN, K))    # Conv1d(C_IN->C_OUT, k=3, bias=False)
    p["conv2_w"] = norm(ks[1], (C_OUT, C_OUT, K))   # Conv1d(C_OUT->C_OUT, k=3, bias=False)
    p["down_w"] = norm(ks[2], (C_OUT, C_IN, 1))     # downsample Conv1d(k=1, bias=False)
    for i, name in enumerate(("bn1", "bn2", "bnd")):
        kg, kb, km, kv = jax.random.split(ks[3 + i], 4)
        p[name + "_gamma"] = 1.0 + 0.1 * jax.random.normal(kg, (C_OUT,), jnp.float32)
        p[name + "_beta"] = 0.1 * jax.random.normal(kb, (C_OUT,), jnp.float32)
        p[name + "_mean"] = 0.1 * jax.random.normal(km, (C_OUT,), jnp.float32)
        p[name + "_var"] = jax.random.uniform(kv, (C_OUT,), jnp.float32, 0.5, 1.5)
    return p


if __name__ == "__main__":
    key = jax.random.PRNGKey(0)
    kx, kp = jax.random.split(key)
    x = jax.random.normal(kx, (B, C_IN, T), jnp.float32)   # (batch, channels, time)
    params = init_params(kp)

    out = jax.jit(residual_block_forward)(x, params)
    out = jax.block_until_ready(out)

    ref = reference_forward(x, params)
    assert out.shape == (B, C_OUT, T)
    assert bool(jnp.all(jnp.isfinite(out)))
    assert bool(jnp.allclose(out, ref, atol=1e-4, rtol=1e-4))
    print("KERNEL_OK")
</pallas_src>

<mosaic_0001>
module attributes {stable_mosaic.version = 11 : i64} {
  func.func @resblock_kernel(%arg0: memref<4x256xf32, #tpu.memory_space<vmem>>, %arg1: memref<8x42xf32, #tpu.memory_space<vmem>>, %arg2: memref<8x256xf32, #tpu.memory_space<vmem>>) attributes {dimension_semantics = [], scalar_prefetch = 0 : i64, scratch_operands = 0 : i64, tpu.core_type = #tpu.core_type<tc>} {
    %c0 = arith.constant 0 : index
    %c0_0 = arith.constant 0 : index
    %0 = vector.load %arg0[%c0, %c0_0] : memref<4x256xf32, #tpu.memory_space<vmem>>, vector<4x256xf32>
    %1 = tpu.iota {dimensions = array<i32: 1>} : vector<1x256xi32>
    %c128_i32 = arith.constant 128 : i32
    %c0_i32 = arith.constant 0 : i32
    %2 = arith.cmpi eq, %c128_i32, %c0_i32 : i32
    %c1_i32 = arith.constant 1 : i32
    %3 = arith.select %2, %c1_i32, %c128_i32 : i32
    %4 = vector.broadcast %3 : i32 to vector<1x256xi32>
    %5 = arith.remsi %1, %4 : vector<1x256xi32>
    %c0_i32_1 = arith.constant 0 : i32
    %6 = vector.broadcast %c0_i32_1 : i32 to vector<1x256xi32>
    %7 = arith.cmpi ne, %5, %6 : vector<1x256xi32>
    %c0_i32_2 = arith.constant 0 : i32
    %8 = vector.broadcast %c0_i32_2 : i32 to vector<1x256xi32>
    %9 = arith.cmpi slt, %5, %8 : vector<1x256xi32>
    %c0_i32_3 = arith.constant 0 : i32
    %10 = arith.cmpi slt, %3, %c0_i32_3 : i32
    %11 = vector.broadcast %10 : i1 to vector<1x256xi1>
    %12 = vector.broadcast %11 : vector<1x256xi1> to vector<1x256xi1>
    %13 = arith.xori %9, %12 : vector<1x256xi1>
    %14 = arith.andi %13, %7 : vector<1x256xi1>
    %15 = vector.broadcast %3 : i32 to vector<1x256xi32>
    %16 = arith.addi %5, %15 : vector<1x256xi32>
    %17 = arith.select %14, %16, %5 : vector<1x256xi1>, vector<1x256xi32>
    %c0_i32_4 = arith.constant 0 : i32
    %18 = vector.broadcast %c0_i32_4 : i32 to vector<1x256xi32>
    %19 = arith.cmpi eq, %17, %18 : vector<1x256xi32>
    %c127_i32 = arith.constant 127 : i32
    %20 = vector.broadcast %c127_i32 : i32 to vector<1x256xi32>
    %21 = arith.cmpi eq, %17, %20 : vector<1x256xi32>
    %c0_5 = arith.constant 0 : index
    %c0_6 = arith.constant 0 : index
    %22 = vector.load %arg1[%c0_5, %c0_6] : memref<8x42xf32, #tpu.memory_space<vmem>>, vector<8x12xf32>
    %c0_7 = arith.constant 0 : index
    %c12 = arith.constant 12 : index
    %23 = vector.load %arg1[%c0_7, %c12] : memref<8x42xf32, #tpu.memory_space<vmem>>, vector<8x28xf32>
    %c0_8 = arith.constant 0 : index
    %c40 = arith.constant 40 : index
    %24 = vector.load %arg1[%c0_8, %c40] : memref<8x42xf32, #tpu.memory_space<vmem>>, vector<8x1xf32>
    %c0_9 = arith.constant 0 : index
    %c41 = arith.constant 41 : index
    %25 = vector.load %arg1[%c0_9, %c41] : memref<8x42xf32, #tpu.memory_space<vmem>>, vector<8x1xf32>
    %c1_i32_10 = arith.constant 1 : i32
    %26 = tpu.dynamic_rotate %0 by %c1_i32_10 dim 1 : vector<4x256xf32>, i32 -> vector<4x256xf32>
    %cst = arith.constant 0.000000e+00 : f32
    %27 = vector.shape_cast %19 : vector<1x256xi1> to vector<1x256xi1>
    %28 = vector.broadcast %27 : vector<1x256xi1> to vector<4x256xi1>
    %29 = vector.broadcast %cst : f32 to vector<4x256xf32>
    %30 = arith.select %28, %29, %26 : vector<4x256xi1>, vector<4x256xf32>
    %c255_i32 = arith.constant 255 : i32
    %31 = tpu.dynamic_rotate %0 by %c255_i32 dim 1 : vector<4x256xf32>, i32 -> vector<4x256xf32>
    %cst_11 = arith.constant 0.000000e+00 : f32
    %32 = vector.shape_cast %21 : vector<1x256xi1> to vector<1x256xi1>
    %33 = vector.broadcast %32 : vector<1x256xi1> to vector<4x256xi1>
    %34 = vector.broadcast %cst_11 : f32 to vector<4x256xf32>
    %35 = arith.select %33, %34, %31 : vector<4x256xi1>, vector<4x256xf32>
    %36 = tpu.concatenate %30, %0, %35 in 0 : vector<4x256xf32>, vector<4x256xf32>, vector<4x256xf32> -> vector<12x256xf32>
    %cst_12 = arith.constant dense<0.000000e+00> : vector<8x256xf32>
    %37 = tpu.matmul %22, %36, %cst_12 {dimension_numbers = #tpu.dot_dimension_numbers<[1], [0], [0], [1], [0, 0, 1, 1], [], []>} : vector<8x12xf32>, vector<12x256xf32>, vector<8x256xf32> -> vector<8x256xf32>
    %38 = vector.broadcast %24 : vector<8x1xf32> to vector<8x256xf32>
    %39 = arith.addf %37, %38 : vector<8x256xf32>
    %cst_13 = arith.constant 0.000000e+00 : f32
    %40 = vector.broadcast %cst_13 : f32 to vector<8x256xf32>
    %41 = arith.maximumf %39, %40 : vector<8x256xf32>
    %c1_i32_14 = arith.constant 1 : i32
    %42 = tpu.dynamic_rotate %41 by %c1_i32_14 dim 1 : vector<8x256xf32>, i32 -> vector<8x256xf32>
    %cst_15 = arith.constant 0.000000e+00 : f32
    %43 = vector.shape_cast %19 : vector<1x256xi1> to vector<1x256xi1>
    %44 = vector.broadcast %43 : vector<1x256xi1> to vector<8x256xi1>
    %45 = vector.broadcast %cst_15 : f32 to vector<8x256xf32>
    %46 = arith.select %44, %45, %42 : vector<8x256xi1>, vector<8x256xf32>
    %c255_i32_16 = arith.constant 255 : i32
    %47 = tpu.dynamic_rotate %41 by %c255_i32_16 dim 1 : vector<8x256xf32>, i32 -> vector<8x256xf32>
    %cst_17 = arith.constant 0.000000e+00 : f32
    %48 = vector.shape_cast %21 : vector<1x256xi1> to vector<1x256xi1>
    %49 = vector.broadcast %48 : vector<1x256xi1> to vector<8x256xi1>
    %50 = vector.broadcast %cst_17 : f32 to vector<8x256xf32>
    %51 = arith.select %49, %50, %47 : vector<8x256xi1>, vector<8x256xf32>
    %52 = tpu.concatenate %46, %41, %51 in 0 : vector<8x256xf32>, vector<8x256xf32>, vector<8x256xf32> -> vector<24x256xf32>
    %53 = tpu.concatenate %52, %0 in 0 : vector<24x256xf32>, vector<4x256xf32> -> vector<28x256xf32>
    %cst_18 = arith.constant dense<0.000000e+00> : vector<8x256xf32>
    %54 = tpu.matmul %23, %53, %cst_18 {dimension_numbers = #tpu.dot_dimension_numbers<[1], [0], [0], [1], [0, 0, 1, 1], [], []>} : vector<8x28xf32>, vector<28x256xf32>, vector<8x256xf32> -> vector<8x256xf32>
    %55 = vector.broadcast %25 : vector<8x1xf32> to vector<8x256xf32>
    %56 = arith.addf %54, %55 : vector<8x256xf32>
    %cst_19 = arith.constant 0.000000e+00 : f32
    %57 = vector.broadcast %cst_19 : f32 to vector<8x256xf32>
    %58 = arith.maximumf %56, %57 : vector<8x256xf32>
    %c0_20 = arith.constant 0 : index
    %c0_21 = arith.constant 0 : index
    %59 = vector.load %arg2[%c0_20, %c0_21] : memref<8x256xf32, #tpu.memory_space<vmem>>, vector<8x256xf32>
    tpu.vector_store %arg2[%c0_20, %c0_21], %58 {strides = array<i32>} : memref<8x256xf32, #tpu.memory_space<vmem>>, vector<8x256xf32>,
    return
  }
}

</mosaic_0001>

<llo_original>
// kernel: residual_block_forward.1
$region0: #{residual_block_forward.1}
  #allocation0 [shape = 'u32[]', space=smem, size = 0x4, offset = 0x4, fixed_abs, tag = 'smem constant byte address 0x4 - core index']
  #allocation1 [shape = 'u32[144,128]{1,0:T(1,128)}', space=vmem, size = 0x12000, scoped, tag = 'internal scratch']
  %s0 = inlined_call_operand.vmem [shape: f32[4,256], index: 0, kind: input, shape index: {}]
  %s1 = inlined_call_operand.vmem [shape: f32[8,42], index: 1, kind: input, shape index: {}]
  %s2 = inlined_call_operand.hbm [shape: f32[8,256], index: 2, kind: output, shape index: {}]
  %s3 = sld [smem:[#allocation0]]
  $region18: #{residual_block_forward.1} parent=0
    _
  %s5 = ssub.s32 1, %s3
  %s6 = scalar_select 0, %s5, %s3
  $region1: #{residual_block_forward.1} parent=0
    #allocation2 [shape = 'u8[8192]{0}', space=vmem, size = 0x2000, scoped, tag = 'output window, operand 0, single buffered']
    #allocation3 [shape = 's32[1]{0}', space=sflag, size = 0x4, scoped, tag = 'scoped memory for residual_block_forward.1']
    %7 = vsyncpa [#allocation3], 0
    // Predicated region
    $region2: #{residual_block_forward.1} parent=1 // pred_check
      _
    $region3: #{residual_block_forward.1} parent=1 // pred_check_branch
      %9 = sbr.rel (0) target = $region5
    $region4: #{residual_block_forward.1} parent=1 // pred_region
      _
    $region5: #{residual_block_forward.1} parent=1 // pred_fallthru
      _
    // Predicated region
    $region6: #{residual_block_forward.1} parent=1 // pred_check
      _
    $region7: #{residual_block_forward.1} parent=1 // pred_check_branch
      %11 = sbr.rel (0) target = $region9
    $region8: #{residual_block_forward.1} parent=1 // pred_region
      _
    $region9: #{residual_block_forward.1} parent=1 // pred_fallthru
      _
    %v12 = vld [vmem:[%s0] sm:$0xff]
    %v13 = vlaneseq
    %v14 = vand.u32 %v13, 127
    %v15 = vadd.s32 %v14, 128
    %vm16 = vcmp.lt.s32.totalorder %v14, 0
    %v17 = vsub.s32 0, %v14
    %v18 = vsel %vm16, %v17, %v14
    %v19 = vshrl.u32 %v18, 7
    %v20 = vand.u32 %v18, 127
    %v21 = vsub.s32 0, %v20
    %v22 = vsel %vm16, %v21, %v20
    %vm23 = vcmp.lt.s32.totalorder %v15, 0
    %v24 = vsub.s32 0, %v15
    %v25 = vsel %vm23, %v24, %v15
    %v26 = vshrl.u32 %v25, 7
    %v27 = vand.u32 %v25, 127
    %v28 = vsub.s32 0, %v27
    %v29 = vsel %vm23, %v28, %v27
    %vm30 = vcmp.ne.s32.totalorder %v22, 0
    %vm31 = vcmp.ne.s32.totalorder %v29, 0
    %vm32 = vcmp.lt.s32.totalorder %v22, 0
    %vm33 = vcmp.lt.s32.totalorder %v29, 0
    %vm34 = vmand %vm32, %vm30
    %vm35 = vmand %vm33, %vm31
    %v36 = vadd.s32 %v22, 128
    %v37 = vadd.s32 %v29, 128
    %v38 = vsel %vm34, %v36, %v22
    %v39 = vsel %vm35, %v37, %v29
    %vm40 = vcmp.eq.s32.totalorder %v38, 0
    %vm41 = vcmp.eq.s32.totalorder %v39, 0
    %vm42 = vcmp.eq.s32.totalorder %v38, 127
    %vm43 = vcmp.eq.s32.totalorder %v39, 127
    %v44 = vld [vmem:[%s1] sm:$0xff]
    %v46 = vcombine.high %v12, %v12
    %48 = vrot.lane.b32.xlu0 %v12, 1
    %v49 = vpop.permute.xlu0 %48
    %50 = vrot.lane.b32.xlu0 %v46, 1
    %v51 = vpop.permute.xlu0 %50
    %vm52 = vcmp.lt.s32.totalorder %v14, 1
    %v53 = vsel %vm52, %v49, %v51
    %v54 = vsel %vm52, %v51, %v49
    %v55 = vsel %vm40, 1, 0
    %v56 = vsel %vm41, 1, 0
    %vm57 = vcmp.eq.s32.totalorder %v55, 1
    %vm58 = vcmp.eq.s32.totalorder %v56, 1
    %v59 = vsel %vm57, 0.0, %v54
    %v60 = vsel %vm58, 0.0, %v53
    %61 = vrot.lane.b32.xlu0 %v12, 127
    %v62 = vpop.permute.xlu0 %61
    %63 = vrot.lane.b32.xlu0 %v46, 127
    %v64 = vpop.permute.xlu0 %63
    %vm65 = vcmp.lt.s32.totalorder %v14, 127
    %v66 = vsel %vm65, %v62, %v64
    %v67 = vsel %vm65, %v64, %v62
    %v68 = vsel %vm42, 1, 0
    %v69 = vsel %vm43, 1, 0
    %vm70 = vcmp.eq.s32.totalorder %v68, 1
    %vm71 = vcmp.eq.s32.totalorder %v69, 1
    %v72 = vsel %vm70, 0.0, %v66
    %v73 = vsel %vm71, 0.0, %v67
    %v74 = vcombine.low %v12, %v12
    %vm76 = vcmask 1043456
    %v77 = vsel %vm76, %v59, %v74
    %v78 = vsel %vm76, %v60, %v12
    %80 = vset.pattern.permute.xlu0 40
    %81 = vperm.xlu0 %80, %v44
    %v82 = vpop.permute.xlu0 %81
    %vm84 = vcmask 97280
    %v85 = vsel %vm84, %v44, 0
    %v88 = vsel %vm76, %v72, 0
    %v91 = vsel %vm76, %v73, 0
    %93 = vmatprep.subr.mxu0 0.0
    %94 = vmatpush1.msra.mxu0 0.0
    %95 = vmatprep.subr.mxu0 0.0
    %96 = vmatpush1.msra.mxu0 0.0
    %97 = vmatprep.subr.mxu0 0.0
    %98 = vmatpush1.msra.mxu0 0.0
    %99 = vmatprep.subr.mxu0 0.0
    %100 = vmatpush1.msra.mxu0 0.0
    %101 = vmatprep.subr.mxu0 0.0
    %102 = vmatpush1.msra.mxu0 0.0
    %103 = vmatprep.subr.mxu0 0.0
    %104 = vmatpush1.msra.mxu0 0.0
    %105 = vmatprep.subr.mxu0 0.0
    %106 = vmatpush1.msra.mxu0 0.0
    %107 = vmatprep.subr.mxu0 0.0
    %108 = vmatpush1.msra.mxu0 0.0
    %109 = vmatprep.subr.mxu0 0.0
    %110 = vmatpush1.msra.mxu0 0.0
    %111 = vmatprep.subr.mxu0 0.0
    %112 = vmatpush1.msra.mxu0 0.0
    %113 = vmatprep.subr.mxu0 0.0
    %114 = vmatpush1.msra.mxu0 0.0
    %115 = vmatprep.subr.mxu0 0.0
    %116 = vmatpush1.msra.mxu0 0.0
    %117 = vmatprep.subr.mxu0 0.0
    %118 = vmatpush1.msra.mxu0 0.0
    %119 = vmatprep.subr.mxu0 0.0
    %120 = vmatpush1.msra.mxu0 0.0
    %121 = vmatprep.subr.mxu0 %v91
    %122 = vmatpush1.msra.mxu0 %v88
    %123 = vmatprep.subr.mxu0 %v78
    %124 = vmatpush1.msra.mxu0 %v77
    %125 = vmatprep.subr.mxu0 0.0
    %126 = vmatpush2.msra.mxu0 0.0
    %127 = vmatprep.subr.mxu0 0.0
    %128 = vmatpush2.msra.mxu0 0.0
    %129 = vmatprep.subr.mxu0 0.0
    %130 = vmatpush2.msra.mxu0 0.0
    %131 = vmatprep.subr.mxu0 0.0
    %132 = vmatpush2.msra.mxu0 0.0
    %133 = vmatprep.subr.mxu0 0.0
    %134 = vmatpush2.msra.mxu0 0.0
    %135 = vmatprep.subr.mxu0 0.0
    %136 = vmatpush2.msra.mxu0 0.0
    %137 = vmatprep.subr.mxu0 0.0
    %138 = vmatpush2.msra.mxu0 0.0
    %139 = vmatprep.subr.mxu0 0.0
    %140 = vmatpush2.msra.mxu0 0.0
    %141 = vmatprep.subr.mxu0 0.0
    %142 = vmatpush2.msra.mxu0 0.0
    %143 = vmatprep.subr.mxu0 0.0
    %144 = vmatpush2.msra.mxu0 0.0
    %145 = vmatprep.subr.mxu0 0.0
    %146 = vmatpush2.msra.mxu0 0.0
    %147 = vmatprep.subr.mxu0 0.0
    %148 = vmatpush2.msra.mxu0 0.0
    %149 = vmatprep.subr.mxu0 0.0
    %150 = vmatpush2.msra.mxu0 0.0
    %151 = vmatprep.subr.mxu0 0.0
    %152 = vmatpush2.msra.mxu0 0.0
    %153 = vmatprep.subr.mxu0 0.0
    %154 = vmatpush2.msra.mxu0 0.0
    %155 = vmatprep.subr.mxu0 0.0
    %156 = vmatpush2.msra.mxu0 0.0
    %157 = vmatprep.mubr.f32.mxu0 0.0
    %158 = vmatmul.mubr.f32.gmra.mxu0 %v85
    %v159 = vpop.f32.mrf.mxu0
    %v160 = vadd.f32 %v82, %v159
    %v161 = vpop.f32.mrf.mxu0
    %v162 = vadd.f32 %v82, %v161
    %163 = vdwg.mxu0
    %v164 = vmax.f32 %v160, 0.0
    %v165 = vmax.f32 %v162, 0.0
    %166 = vrot.lane.b32.xlu0 %v164, 1
    %v167 = vpop.permute.xlu0 %166
    %168 = vrot.lane.b32.xlu0 %v165, 1
    %v169 = vpop.permute.xlu0 %168
    %v170 = vsel %vm52, %v167, %v169
    %v171 = vsel %vm52, %v169, %v167
    %v172 = vsel %vm57, 0.0, %v171
    %v173 = vsel %vm58, 0.0, %v170
    %174 = vrot.lane.b32.xlu0 %v164, 127
    %v175 = vpop.permute.xlu0 %174
    %176 = vrot.lane.b32.xlu0 %v165, 127
    %v177 = vpop.permute.xlu0 %176
    %v178 = vsel %vm65, %v175, %v177
    %v179 = vsel %vm65, %v177, %v175
    %v180 = vsel %vm70, 0.0, %v178
    %v181 = vsel %vm71, 0.0, %v179
    %182 = vset.pattern.permute.xlu0 41
    %183 = vperm.xlu0 %182, %v44
    %v184 = vpop.permute.xlu0 %183
    %186 = vrot.lane.b32.xlu0 %v44, 116
    %v187 = vpop.permute.xlu0 %186
    %vm188 = vcmask 228352
    %v189 = vsel %vm188, %v187, 0
    %v191 = vsel %vm76, %v12, 0
    %v193 = vsel %vm76, %v46, 0
    %195 = vmatprep.subr.mxu0 0.0
    %196 = vmatpush1.msra.mxu0 0.0
    %197 = vmatprep.subr.mxu0 0.0
    %198 = vmatpush1.msra.mxu0 0.0
    %199 = vmatprep.subr.mxu0 0.0
    %200 = vmatpush1.msra.mxu0 0.0
    %201 = vmatprep.subr.mxu0 0.0
    %202 = vmatpush1.msra.mxu0 0.0
    %203 = vmatprep.subr.mxu0 0.0
    %204 = vmatpush1.msra.mxu0 0.0
    %205 = vmatprep.subr.mxu0 0.0
    %206 = vmatpush1.msra.mxu0 0.0
    %207 = vmatprep.subr.mxu0 0.0
    %208 = vmatpush1.msra.mxu0 0.0
    %209 = vmatprep.subr.mxu0 0.0
    %210 = vmatpush1.msra.mxu0 0.0
    %211 = vmatprep.subr.mxu0 0.0
    %212 = vmatpush1.msra.mxu0 0.0
    %213 = vmatprep.subr.mxu0 0.0
    %214 = vmatpush1.msra.mxu0 0.0
    %215 = vmatprep.subr.mxu0 0.0
    %216 = vmatpush1.msra.mxu0 0.0
    %217 = vmatprep.subr.mxu0 0.0
    %218 = vmatpush1.msra.mxu0 0.0
    %219 = vmatprep.subr.mxu0 %v193
    %220 = vmatpush1.msra.mxu0 %v191
    %221 = vmatprep.subr.mxu0 %v181
    %222 = vmatpush1.msra.mxu0 %v180
    %223 = vmatprep.subr.mxu0 %v165
    %224 = vmatpush1.msra.mxu0 %v164
    %225 = vmatprep.subr.mxu0 %v173
    %226 = vmatpush1.msra.mxu0 %v172
    %227 = vmatprep.subr.mxu0 0.0
    %228 = vmatpush2.msra.mxu0 0.0
    %229 = vmatprep.subr.mxu0 0.0
    %230 = vmatpush2.msra.mxu0 0.0
    %231 = vmatprep.subr.mxu0 0.0
    %232 = vmatpush2.msra.mxu0 0.0
    %233 = vmatprep.subr.mxu0 0.0
    %234 = vmatpush2.msra.mxu0 0.0
    %235 = vmatprep.subr.mxu0 0.0
    %236 = vmatpush2.msra.mxu0 0.0
    %237 = vmatprep.subr.mxu0 0.0
    %238 = vmatpush2.msra.mxu0 0.0
    %239 = vmatprep.subr.mxu0 0.0
    %240 = vmatpush2.msra.mxu0 0.0
    %241 = vmatprep.subr.mxu0 0.0
    %242 = vmatpush2.msra.mxu0 0.0
    %243 = vmatprep.subr.mxu0 0.0
    %244 = vmatpush2.msra.mxu0 0.0
    %245 = vmatprep.subr.mxu0 0.0
    %246 = vmatpush2.msra.mxu0 0.0
    %247 = vmatprep.subr.mxu0 0.0
    %248 = vmatpush2.msra.mxu0 0.0
    %249 = vmatprep.subr.mxu0 0.0
    %250 = vmatpush2.msra.mxu0 0.0
    %251 = vmatprep.subr.mxu0 0.0
    %252 = vmatpush2.msra.mxu0 0.0
    %253 = vmatprep.subr.mxu0 0.0
    %254 = vmatpush2.msra.mxu0 0.0
    %255 = vmatprep.subr.mxu0 0.0
    %256 = vmatpush2.msra.mxu0 0.0
    %257 = vmatprep.subr.mxu0 0.0
    %258 = vmatpush2.msra.mxu0 0.0
    %259 = vmatprep.mubr.f32.mxu0 0.0
    %260 = vmatmul.mubr.f32.gmra.mxu0 %v189
    %v261 = vpop.f32.mrf.mxu0
    %v262 = vadd.f32 %v184, %v261
    %v263 = vpop.f32.mrf.mxu0
    %v264 = vadd.f32 %v184, %v263
    %265 = vdwg.mxu0
    %v266 = vmax.f32 %v262, 0.0
    %v267 = vmax.f32 %v264, 0.0
    %268 = vst [vmem:[#allocation2] sm:$0xff] %v266
    %269 = vst [vmem:[#allocation2 + $0x8] sm:$0xff] %v267
    // Predicated region
    $region10: #{residual_block_forward.1} parent=1 // pred_check
      _
    $region11: #{residual_block_forward.1} parent=1 // pred_check_branch
      %271 = sbr.rel (0) target = $region13
    $region12: #{residual_block_forward.1} parent=1 // pred_region
      %s273 = ssub.s32 256, 256
      %274 = vsyncadd [#allocation3], %s273
      %s276 = sshll.u32 [#allocation2], 4
      %s277 = int_to_ptr.vmem [resolvable:$true] %s276
      %279 = dma.vmem_to_hbm [thread:$0]  %s277, 256, %s2, [#allocation3]
    $region13: #{residual_block_forward.1} parent=1 // pred_fallthru
      _
    // Predicated region
    $region14: #{residual_block_forward.1} parent=1 // pred_check
      _
    $region15: #{residual_block_forward.1} parent=1 // pred_check_branch
      %281 = sbr.rel (0) target = $region17
    $region16: #{residual_block_forward.1} parent=1 // pred_region
      %282 = dma.done [#allocation3], 256
    $region17: #{residual_block_forward.1} parent=1 // pred_fallthru
      _
    %283 = vsyncpa [#allocation3], 1

</llo_original>
